<compile_context>
chip_gen: v7x
topology: tpu7x:2x2x1
jax: 0.10.0
libtpu: 0.0.40
codegen_flags: <defaults>
</compile_context>

<pallas_src>
import jax
import jax.numpy as jnp
from jax.experimental import pallas as pl
from jax.experimental.pallas import tpu as pltpu

EPS = 1e-5  # nn.LayerNorm default


def _round_up(x, m):
    return (x + m - 1) // m * m


def _make_prenorm_kernel(d_true, d_pad):
    """Kernel closure over the true / padded feature dims."""
    need_mask = d_pad != d_true
    inv_d = 1.0 / float(d_true)

    def kernel(x_ref, gamma_ref, beta_ref, w_ref, bias_ref, o_ref):
        # x_ref: (tm, Dp) tile of flattened tokens (lane-dense, Dp % 128 == 0)
        x = x_ref[...].astype(jnp.float32)
        if need_mask:
            mask = jax.lax.broadcasted_iota(jnp.int32, (1, d_pad), 1) < d_true
            x = jnp.where(mask, x, 0.0)

        # LayerNorm over the true D (biased variance, like torch.nn.LayerNorm),
        # statistics kept in f32.
        mean = jnp.sum(x, axis=-1, keepdims=True) * inv_d
        cen = x - mean
        if need_mask:
            cen = jnp.where(mask, cen, 0.0)   # zero out padded lanes
        var = jnp.sum(cen * cen, axis=-1, keepdims=True) * inv_d
        xn = cen * jax.lax.rsqrt(var + EPS)
        y = xn * gamma_ref[...].astype(jnp.float32) + beta_ref[...].astype(jnp.float32)

        # Wrapped fn (Linear dim->dim) fused as MXU matmul epilogue:
        # bf16 operands, f32 accumulation (native MXU path).
        out = jnp.dot(y.astype(w_ref.dtype), w_ref[...],
                      preferred_element_type=jnp.float32)
        out = out + bias_ref[...].astype(jnp.float32)
        o_ref[...] = out.astype(o_ref.dtype)

    return kernel


def prenorm(x, gamma, beta, w, bias, *, tm=256, matmul_dtype=jnp.bfloat16):
    """x: (B, N, D) -> (B, N, D).  LayerNorm(D) then Linear(D, D) (the PreNorm fn)."""
    B, N, D = x.shape
    M = B * N
    out_dtype = x.dtype

    # Lane-dense last dim + large row tile (amortizes ~600-cycle grid-step cost).
    Dp = _round_up(D, 128)
    tm = _round_up(max(tm, 8), 8)
    tm_eff = min(tm, _round_up(M, 8))
    Mp = _round_up(M, tm_eff)
    grid = (Mp // tm_eff,)

    xf = x.reshape(M, D)
    if (Mp, Dp) != (M, D):
        xf = jnp.pad(xf, ((0, Mp - M), (0, Dp - D)))

    def pad_vec(v):
        v = v.reshape(1, D).astype(jnp.float32)
        if Dp != D:
            v = jnp.pad(v, ((0, 0), (0, Dp - D)))
        return v

    gamma_p, beta_p, bias_p = pad_vec(gamma), pad_vec(beta), pad_vec(bias)
    w_p = w
    if Dp != D:
        w_p = jnp.pad(w_p, ((0, Dp - D), (0, Dp - D)))
    w_p = w_p.astype(matmul_dtype)  # cast ONCE here, not per grid step on the VPU

    kernel = _make_prenorm_kernel(D, Dp)

    # Advisory cost so XLA can schedule/overlap around the custom call.
    cost = pl.CostEstimate(
        flops=int(2 * Mp * Dp * Dp + 8 * Mp * Dp),
        transcendentals=int(Mp),
        bytes_accessed=int(xf.size * xf.dtype.itemsize
                           + Mp * Dp * jnp.dtype(out_dtype).itemsize
                           + w_p.size * w_p.dtype.itemsize
                           + 3 * Dp * 4),
    )

    # VMEM budget: double-buffered x/out tiles + resident params, 2x margin,
    # clamped so a tile tuned for v5e/v6e still fits v7x's 64 MiB physical VMEM.
    need = (2 * tm_eff * Dp * xf.dtype.itemsize
            + 2 * tm_eff * Dp * jnp.dtype(out_dtype).itemsize
            + 2 * Dp * Dp * jnp.dtype(matmul_dtype).itemsize
            + 8 * Dp * 4)
    vmem_limit = int(min(max(2 * need, 16 * 2**20), 48 * 2**20))

    cparams = pltpu.CompilerParams(
        dimension_semantics=("parallel",),
        vmem_limit_bytes=vmem_limit,
    )

    def build(single_buffer_consts):
        if single_buffer_consts:
            # Constant index_map -> the block never changes; single-buffer it to
            # free VMEM headroom for the big row tile.
            def const_spec(shape):
                return pl.BlockSpec(shape, lambda i: (0, 0),
                                    pipeline_mode=pl.Buffered(1))
        else:
            def const_spec(shape):
                return pl.BlockSpec(shape, lambda i: (0, 0))

        return pl.pallas_call(
            kernel,
            out_shape=jax.ShapeDtypeStruct((Mp, Dp), out_dtype),
            grid_spec=pltpu.PrefetchScalarGridSpec(
                num_scalar_prefetch=0,
                grid=grid,
                in_specs=[
                    pl.BlockSpec((tm_eff, Dp), lambda i: (i, 0)),  # x tile (pipelined)
                    const_spec((1, Dp)),    # gamma
                    const_spec((1, Dp)),    # beta
                    const_spec((Dp, Dp)),   # fn weight (VMEM-resident)
                    const_spec((1, Dp)),    # fn bias
                ],
                out_specs=pl.BlockSpec((tm_eff, Dp), lambda i: (i, 0)),
            ),
            compiler_params=cparams,
            cost_estimate=cost,
        )

    try:
        out = build(True)(xf, gamma_p, beta_p, w_p, bias_p)
    except Exception:
        # pl.Buffered(1) not supported on this jax build -> default buffering.
        out = build(False)(xf, gamma_p, beta_p, w_p, bias_p)

    return out[:M, :D].reshape(B, N, D)


def _reference(x, gamma, beta, w, bias):
    mean = jnp.mean(x, axis=-1, keepdims=True)
    var = jnp.mean((x - mean) ** 2, axis=-1, keepdims=True)
    xn = (x - mean) / jnp.sqrt(var + EPS)
    y = xn * gamma + beta
    return jnp.einsum("bnd,de->bne", y, w) + bias


if __name__ == "__main__":
    key = jax.random.PRNGKey(0)

    # TNT-like token shapes: (b*h*w patches, num_pixels, pixel_dim).
    #  - (2, 16, 48): small pixel_dim exercises the lane-padding (48 -> 128) path
    #  - (2,  8, 128): already lane-aligned feature dim
    for (B, N, D) in [(2, 16, 48), (2, 8, 128)]:
        kx, kg, kb, kw, kbias, key = jax.random.split(key, 6)

        x = jax.random.normal(kx, (B, N, D), dtype=jnp.float32)
        gamma = 1.0 + 0.1 * jax.random.normal(kg, (D,), dtype=jnp.float32)
        beta = 0.05 * jax.random.normal(kb, (D,), dtype=jnp.float32)
        w = jax.random.normal(kw, (D, D), dtype=jnp.float32) * 0.02
        bias = jax.random.normal(kbias, (D,), dtype=jnp.float32) * 0.01

        out = prenorm(x, gamma, beta, w, bias)
        out = jax.block_until_ready(out)

        ref = _reference(x, gamma, beta, w, bias)
        assert out.shape == (B, N, D)
        # bf16 MXU operands (f32 accumulation) -> loosen tolerance vs. pure f32 ref.
        assert jnp.allclose(out, ref, atol=1e-2, rtol=1e-2), (
            "max abs err", float(jnp.max(jnp.abs(out - ref))))

    print("KERNEL_OK")
</pallas_src>

<mosaic_0001>
module attributes {stable_mosaic.version = 11 : i64} {
  func.func @kernel(%arg0: i32, %arg1: memref<32x128xf32, #tpu.memory_space<vmem>>, %arg2: memref<1x128xf32, #tpu.memory_space<vmem>>, %arg3: memref<1x128xf32, #tpu.memory_space<vmem>>, %arg4: memref<128x128xbf16, #tpu.memory_space<vmem>>, %arg5: memref<1x128xf32, #tpu.memory_space<vmem>>, %arg6: memref<32x128xf32, #tpu.memory_space<vmem>>) attributes {dimension_semantics = [#tpu.dimension_semantics<parallel>], iteration_bounds = array<i64: 1>, scalar_prefetch = 0 : i64, scratch_operands = 0 : i64, tpu.core_type = #tpu.core_type<tc>, window_params = [{transform_indices = @transform_0, window_bounds = array<i64: 32, 128>}, {pipeline_mode = #tpu.pipeline_mode<synchronous>, transform_indices = @transform_1, window_bounds = array<i64: 1, 128>}, {pipeline_mode = #tpu.pipeline_mode<synchronous>, transform_indices = @transform_2, window_bounds = array<i64: 1, 128>}, {pipeline_mode = #tpu.pipeline_mode<synchronous>, transform_indices = @transform_3, window_bounds = array<i64: 128, 128>}, {pipeline_mode = #tpu.pipeline_mode<synchronous>, transform_indices = @transform_4, window_bounds = array<i64: 1, 128>}, {transform_indices = @transform_5, window_bounds = array<i64: 32, 128>}]} {
    %c0 = arith.constant 0 : index
    %c0_0 = arith.constant 0 : index
    %0 = vector.load %arg1[%c0, %c0_0] : memref<32x128xf32, #tpu.memory_space<vmem>>, vector<32x128xf32>
    %1 = tpu.iota {dimensions = array<i32: 1>} : vector<1x128xi32>
    %c48_i32 = arith.constant 48 : i32
    %2 = vector.broadcast %c48_i32 : i32 to vector<1x128xi32>
    %3 = arith.cmpi slt, %1, %2 : vector<1x128xi32>
    %cst = arith.constant 0.000000e+00 : f32
    %4 = vector.shape_cast %3 : vector<1x128xi1> to vector<1x128xi1>
    %5 = vector.broadcast %4 : vector<1x128xi1> to vector<32x128xi1>
    %6 = vector.broadcast %cst : f32 to vector<32x128xf32>
    %7 = arith.select %5, %0, %6 : vector<32x128xi1>, vector<32x128xf32>
    %cst_1 = arith.constant dense<0.000000e+00> : vector<32xf32>
    %8 = vector.multi_reduction <add>, %7, %cst_1 [1] : vector<32x128xf32> to vector<32xf32>
    %9 = vector.shape_cast %8 : vector<32xf32> to vector<32x1xf32>
    %cst_2 = arith.constant 0.020833334 : f32
    %10 = vector.broadcast %cst_2 : f32 to vector<32x1xf32>
    %11 = arith.mulf %9, %10 : vector<32x1xf32>
    %12 = vector.broadcast %11 : vector<32x1xf32> to vector<32x128xf32>
    %13 = arith.subf %7, %12 : vector<32x128xf32>
    %cst_3 = arith.constant 0.000000e+00 : f32
    %14 = vector.shape_cast %3 : vector<1x128xi1> to vector<1x128xi1>
    %15 = vector.broadcast %14 : vector<1x128xi1> to vector<32x128xi1>
    %16 = vector.broadcast %cst_3 : f32 to vector<32x128xf32>
    %17 = arith.select %15, %13, %16 : vector<32x128xi1>, vector<32x128xf32>
    %18 = arith.mulf %17, %17 : vector<32x128xf32>
    %cst_4 = arith.constant dense<0.000000e+00> : vector<32xf32>
    %19 = vector.multi_reduction <add>, %18, %cst_4 [1] : vector<32x128xf32> to vector<32xf32>
    %20 = vector.shape_cast %19 : vector<32xf32> to vector<32x1xf32>
    %cst_5 = arith.constant 0.020833334 : f32
    %21 = vector.broadcast %cst_5 : f32 to vector<32x1xf32>
    %22 = arith.mulf %20, %21 : vector<32x1xf32>
    %cst_6 = arith.constant 9.99999974E-6 : f32
    %23 = vector.broadcast %cst_6 : f32 to vector<32x1xf32>
    %24 = arith.addf %22, %23 : vector<32x1xf32>
    %25 = math.rsqrt %24 : vector<32x1xf32>
    %26 = vector.broadcast %25 : vector<32x1xf32> to vector<32x128xf32>
    %27 = arith.mulf %17, %26 : vector<32x128xf32>
    %c0_7 = arith.constant 0 : index
    %c0_8 = arith.constant 0 : index
    %28 = vector.load %arg2[%c0_7, %c0_8] : memref<1x128xf32, #tpu.memory_space<vmem>>, vector<1x128xf32>
    %29 = vector.broadcast %28 : vector<1x128xf32> to vector<32x128xf32>
    %30 = arith.mulf %27, %29 : vector<32x128xf32>
    %c0_9 = arith.constant 0 : index
    %c0_10 = arith.constant 0 : index
    %31 = vector.load %arg3[%c0_9, %c0_10] : memref<1x128xf32, #tpu.memory_space<vmem>>, vector<1x128xf32>
    %32 = vector.broadcast %31 : vector<1x128xf32> to vector<32x128xf32>
    %33 = arith.addf %30, %32 : vector<32x128xf32>
    %34 = arith.truncf %33 : vector<32x128xf32> to vector<32x128xbf16>
    %c0_11 = arith.constant 0 : index
    %c0_12 = arith.constant 0 : index
    %35 = vector.load %arg4[%c0_11, %c0_12] : memref<128x128xbf16, #tpu.memory_space<vmem>>, vector<128x128xbf16>
    %cst_13 = arith.constant dense<0.000000e+00> : vector<32x128xf32>
    %36 = tpu.matmul %34, %35, %cst_13 {dimension_numbers = #tpu.dot_dimension_numbers<[1], [0], [0], [1], [0, 0, 1, 1], [], []>} : vector<32x128xbf16>, vector<128x128xbf16>, vector<32x128xf32> -> vector<32x128xf32>
    %c0_14 = arith.constant 0 : index
    %c0_15 = arith.constant 0 : index
    %37 = vector.load %arg5[%c0_14, %c0_15] : memref<1x128xf32, #tpu.memory_space<vmem>>, vector<1x128xf32>
    %38 = vector.broadcast %37 : vector<1x128xf32> to vector<32x128xf32>
    %39 = arith.addf %36, %38 : vector<32x128xf32>
    %c0_16 = arith.constant 0 : index
    %c0_17 = arith.constant 0 : index
    %40 = vector.load %arg6[%c0_16, %c0_17] : memref<32x128xf32, #tpu.memory_space<vmem>>, vector<32x128xf32>
    tpu.vector_store %arg6[%c0_16, %c0_17], %39 {strides = array<i32>} : memref<32x128xf32, #tpu.memory_space<vmem>>, vector<32x128xf32>,
    return
  }
  func.func @transform_0(%arg0: i32) -> (i32, i32) {
    %c0_i32 = arith.constant 0 : i32
    %c0_i32_0 = arith.constant 0 : i32
    return %arg0, %c0_i32 : i32, i32
  }
  func.func @transform_1(%arg0: i32) -> (i32, i32) {
    %c0_i32 = arith.constant 0 : i32
    %c0_i32_0 = arith.constant 0 : i32
    %c0_i32_1 = arith.constant 0 : i32
    return %c0_i32, %c0_i32_0 : i32, i32
  }
  func.func @transform_2(%arg0: i32) -> (i32, i32) {
    %c0_i32 = arith.constant 0 : i32
    %c0_i32_0 = arith.constant 0 : i32
    %c0_i32_1 = arith.constant 0 : i32
    return %c0_i32, %c0_i32_0 : i32, i32
  }
  func.func @transform_3(%arg0: i32) -> (i32, i32) {
    %c0_i32 = arith.constant 0 : i32
    %c0_i32_0 = arith.constant 0 : i32
    %c0_i32_1 = arith.constant 0 : i32
    return %c0_i32, %c0_i32_0 : i32, i32
  }
  func.func @transform_4(%arg0: i32) -> (i32, i32) {
    %c0_i32 = arith.constant 0 : i32
    %c0_i32_0 = arith.constant 0 : i32
    %c0_i32_1 = arith.constant 0 : i32
    return %c0_i32, %c0_i32_0 : i32, i32
  }
  func.func @transform_5(%arg0: i32) -> (i32, i32) {
    %c0_i32 = arith.constant 0 : i32
    %c0_i32_0 = arith.constant 0 : i32
    return %arg0, %c0_i32 : i32, i32
  }
}

module attributes {stable_mosaic.version = 11 : i64} {
  func.func @kernel(%arg0: i32, %arg1: memref<32x128xf32, #tpu.memory_space<vmem>>, %arg2: memref<1x128xf32, #tpu.memory_space<vmem>>, %arg3: memref<1x128xf32, #tpu.memory_space<vmem>>, %arg4: memref<128x128xbf16, #tpu.memory_space<vmem>>, %arg5: memref<1x128xf32, #tpu.memory_space<vmem>>, %arg6: memref<32x128xf32, #tpu.memory_space<vmem>>) attributes {dimension_semantics = [#tpu.dimension_semantics<parallel>], iteration_bounds = array<i64: 1>, scalar_prefetch = 0 : i64, scratch_operands = 0 : i64, tpu.core_type = #tpu.core_type<tc>, window_params = [{transform_indices = @transform_0, window_bounds = array<i64: 32, 128>}, {pipeline_mode = #tpu.pipeline_mode<synchronous>, transform_indices = @transform_1, window_bounds = array<i64: 1, 128>}, {pipeline_mode = #tpu.pipeline_mode<synchronous>, transform_indices = @transform_2, window_bounds = array<i64: 1, 128>}, {pipeline_mode = #tpu.pipeline_mode<synchronous>, transform_indices = @transform_3, window_bounds = array<i64: 128, 128>}, {pipeline_mode = #tpu.pipeline_mode<synchronous>, transform_indices = @transform_4, window_bounds = array<i64: 1, 128>}, {transform_indices = @transform_5, window_bounds = array<i64: 32, 128>}]} {
    %c0 = arith.constant 0 : index
    %c0_0 = arith.constant 0 : index
    %0 = vector.load %arg1[%c0, %c0_0] : memref<32x128xf32, #tpu.memory_space<vmem>>, vector<32x128xf32>
    %1 = tpu.iota {dimensions = array<i32: 1>} : vector<1x128xi32>
    %c48_i32 = arith.constant 48 : i32
    %2 = vector.broadcast %c48_i32 : i32 to vector<1x128xi32>
    %3 = arith.cmpi slt, %1, %2 : vector<1x128xi32>
    %cst = arith.constant 0.000000e+00 : f32
    %4 = vector.shape_cast %3 : vector<1x128xi1> to vector<1x128xi1>
    %5 = vector.broadcast %4 : vector<1x128xi1> to vector<32x128xi1>
    %6 = vector.broadcast %cst : f32 to vector<32x128xf32>
    %7 = arith.select %5, %0, %6 : vector<32x128xi1>, vector<32x128xf32>
    %cst_1 = arith.constant dense<0.000000e+00> : vector<32xf32>
    %8 = vector.multi_reduction <add>, %7, %cst_1 [1] : vector<32x128xf32> to vector<32xf32>
    %9 = vector.shape_cast %8 : vector<32xf32> to vector<32x1xf32>
    %cst_2 = arith.constant 0.020833334 : f32
    %10 = vector.broadcast %cst_2 : f32 to vector<32x1xf32>
    %11 = arith.mulf %9, %10 : vector<32x1xf32>
    %12 = vector.broadcast %11 : vector<32x1xf32> to vector<32x128xf32>
    %13 = arith.subf %7, %12 : vector<32x128xf32>
    %cst_3 = arith.constant 0.000000e+00 : f32
    %14 = vector.shape_cast %3 : vector<1x128xi1> to vector<1x128xi1>
    %15 = vector.broadcast %14 : vector<1x128xi1> to vector<32x128xi1>
    %16 = vector.broadcast %cst_3 : f32 to vector<32x128xf32>
    %17 = arith.select %15, %13, %16 : vector<32x128xi1>, vector<32x128xf32>
    %18 = arith.mulf %17, %17 : vector<32x128xf32>
    %cst_4 = arith.constant dense<0.000000e+00> : vector<32xf32>
    %19 = vector.multi_reduction <add>, %18, %cst_4 [1] : vector<32x128xf32> to vector<32xf32>
    %20 = vector.shape_cast %19 : vector<32xf32> to vector<32x1xf32>
    %cst_5 = arith.constant 0.020833334 : f32
    %21 = vector.broadcast %cst_5 : f32 to vector<32x1xf32>
    %22 = arith.mulf %20, %21 : vector<32x1xf32>
    %cst_6 = arith.constant 9.99999974E-6 : f32
    %23 = vector.broadcast %cst_6 : f32 to vector<32x1xf32>
    %24 = arith.addf %22, %23 : vector<32x1xf32>
    %25 = math.rsqrt %24 : vector<32x1xf32>
    %26 = vector.broadcast %25 : vector<32x1xf32> to vector<32x128xf32>
    %27 = arith.mulf %17, %26 : vector<32x128xf32>
    %c0_7 = arith.constant 0 : index
    %c0_8 = arith.constant 0 : index
    %28 = vector.load %arg2[%c0_7, %c0_8] : memref<1x128xf32, #tpu.memory_space<vmem>>, vector<1x128xf32>
    %29 = vector.broadcast %28 : vector<1x128xf32> to vector<32x128xf32>
    %30 = arith.mulf %27, %29 : vector<32x128xf32>
    %c0_9 = arith.constant 0 : index
    %c0_10 = arith.constant 0 : index
    %31 = vector.load %arg3[%c0_9, %c0_10] : memref<1x128xf32, #tpu.memory_space<vmem>>, vector<1x128xf32>
    %32 = vector.broadcast %31 : vector<1x128xf32> to vector<32x128xf32>
    %33 = arith.addf %30, %32 : vector<32x128xf32>
    %34 = arith.truncf %33 : vector<32x128xf32> to vector<32x128xbf16>
    %c0_11 = arith.constant 0 : index
    %c0_12 = arith.constant 0 : index
    %35 = vector.load %arg4[%c0_11, %c0_12] : memref<128x128xbf16, #tpu.memory_space<vmem>>, vector<128x128xbf16>
    %cst_13 = arith.constant dense<0.000000e+00> : vector<32x128xf32>
    %36 = tpu.matmul %34, %35, %cst_13 {dimension_numbers = #tpu.dot_dimension_numbers<[1], [0], [0], [1], [0, 0, 1, 1], [], []>} : vector<32x128xbf16>, vector<128x128xbf16>, vector<32x128xf32> -> vector<32x128xf32>
    %c0_14 = arith.constant 0 : index
    %c0_15 = arith.constant 0 : index
    %37 = vector.load %arg5[%c0_14, %c0_15] : memref<1x128xf32, #tpu.memory_space<vmem>>, vector<1x128xf32>
    %38 = vector.broadcast %37 : vector<1x128xf32> to vector<32x128xf32>
    %39 = arith.addf %36, %38 : vector<32x128xf32>
    %c0_16 = arith.constant 0 : index
    %c0_17 = arith.constant 0 : index
    %40 = vector.load %arg6[%c0_16, %c0_17] : memref<32x128xf32, #tpu.memory_space<vmem>>, vector<32x128xf32>
    tpu.vector_store %arg6[%c0_16, %c0_17], %39 {strides = array<i32>} : memref<32x128xf32, #tpu.memory_space<vmem>>, vector<32x128xf32>,
    return
  }
  func.func @transform_0(%arg0: i32) -> (i32, i32) {
    %c0_i32 = arith.constant 0 : i32
    %c0_i32_0 = arith.constant 0 : i32
    return %arg0, %c0_i32 : i32, i32
  }
  func.func @transform_1(%arg0: i32) -> (i32, i32) {
    %c0_i32 = arith.constant 0 : i32
    %c0_i32_0 = arith.constant 0 : i32
    %c0_i32_1 = arith.constant 0 : i32
    return %c0_i32, %c0_i32_0 : i32, i32
  }
  func.func @transform_2(%arg0: i32) -> (i32, i32) {
    %c0_i32 = arith.constant 0 : i32
    %c0_i32_0 = arith.constant 0 : i32
    %c0_i32_1 = arith.constant 0 : i32
    return %c0_i32, %c0_i32_0 : i32, i32
  }
  func.func @transform_3(%arg0: i32) -> (i32, i32) {
    %c0_i32 = arith.constant 0 : i32
    %c0_i32_0 = arith.constant 0 : i32
    %c0_i32_1 = arith.constant 0 : i32
    return %c0_i32, %c0_i32_0 : i32, i32
  }
  func.func @transform_4(%arg0: i32) -> (i32, i32) {
    %c0_i32 = arith.constant 0 : i32
    %c0_i32_0 = arith.constant 0 : i32
    %c0_i32_1 = arith.constant 0 : i32
    return %c0_i32, %c0_i32_0 : i32, i32
  }
  func.func @transform_5(%arg0: i32) -> (i32, i32) {
    %c0_i32 = arith.constant 0 : i32
    %c0_i32_0 = arith.constant 0 : i32
    return %arg0, %c0_i32 : i32, i32
  }
}

</mosaic_0001>

<llo_original>
// kernel: tpu_custom_call.1
$region0: #{tpu_custom_call.1}
  #allocation0 [shape = 'u32[]', space=smem, size = 0x4, offset = 0x4, fixed_abs, tag = 'smem constant byte address 0x4 - core index']
  #allocation1 [shape = 'u32[144,128]{1,0:T(1,128)}', space=vmem, size = 0x12000, scoped, tag = 'internal scratch']
  %s0 = inlined_call_operand.hbm [shape: f32[32,128], index: 0, kind: input, shape index: {}]
  %s1 = inlined_call_operand.vmem [shape: f32[1,128], index: 1, kind: input, shape index: {}]
  %s2 = inlined_call_operand.vmem [shape: f32[1,128], index: 2, kind: input, shape index: {}]
  %s3 = inlined_call_operand.hbm [shape: bf16[128,128], index: 3, kind: input, shape index: {}]
  %s4 = inlined_call_operand.vmem [shape: f32[1,128], index: 4, kind: input, shape index: {}]
  %s5 = inlined_call_operand.hbm [shape: f32[32,128], index: 5, kind: output, shape index: {}]
  %s6 = sld [smem:[#allocation0]]
  $region38: #{tpu_custom_call.1} parent=0
    _
  %s8 = ssub.s32 1, %s6
  %s9 = scalar_select 0, %s8, %s6
  $region1: #{tpu_custom_call.1} parent=0
    #allocation2 [shape = 'u8[16384]{0}', space=vmem, size = 0x4000, scoped, tag = 'input window, operand 0, single buffered']
    #allocation3 [shape = 's32[1]{0}', space=sflag, size = 0x4, scoped, tag = 'scoped memory for tpu_custom_call.1']
    #allocation4 [shape = 's32[1]{0}', space=sflag, size = 0x4, scoped, tag = 'scoped memory for tpu_custom_call.1']
    #allocation5 [shape = 'u8[32768]{0}', space=vmem, size = 0x8000, scoped, tag = 'input window, operand 3, single buffered']
    #allocation6 [shape = 's32[1]{0}', space=sflag, size = 0x4, scoped, tag = 'scoped memory for tpu_custom_call.1']
    #allocation7 [shape = 'u8[16384]{0}', space=vmem, size = 0x4000, scoped, tag = 'output window, operand 0, single buffered']
    %10 = vsyncpa [#allocation3], 0
    %11 = vsyncpa [#allocation6], 0
    %12 = vsyncpa [#allocation4], 0
    // Predicated region
    $region2: #{tpu_custom_call.1} parent=1 // pred_check
      _
    $region3: #{tpu_custom_call.1} parent=1 // pred_check_branch
      %14 = sbr.rel (0) target = $region5
    $region4: #{tpu_custom_call.1} parent=1 // pred_region
      %s16 = ssub.s32 512, 512
      %17 = vsyncadd [#allocation3], %s16
      %s18 = sshll.u32 [#allocation2], 4
      %s19 = int_to_ptr.vmem [resolvable:$true] %s18
      %24 = dma.hbm_to_vmem [thread:$0]  %s0, 512, %s19, [#allocation3], 128, 128, 8
    $region5: #{tpu_custom_call.1} parent=1 // pred_fallthru
      _
    // Predicated region
    $region6: #{tpu_custom_call.1} parent=1 // pred_check
      _
    $region7: #{tpu_custom_call.1} parent=1 // pred_check_branch
      %26 = sbr.rel (0) target = $region9
    $region8: #{tpu_custom_call.1} parent=1 // pred_region
      _
    $region9: #{tpu_custom_call.1} parent=1 // pred_fallthru
      _
    // Predicated region
    $region10: #{tpu_custom_call.1} parent=1 // pred_check
      _
    $region11: #{tpu_custom_call.1} parent=1 // pred_check_branch
      %28 = sbr.rel (0) target = $region13
    $region12: #{tpu_custom_call.1} parent=1 // pred_region
      _
    $region13: #{tpu_custom_call.1} parent=1 // pred_fallthru
      _
    // Predicated region
    $region14: #{tpu_custom_call.1} parent=1 // pred_check
      _
    $region15: #{tpu_custom_call.1} parent=1 // pred_check_branch
      %30 = sbr.rel (0) target = $region17
    $region16: #{tpu_custom_call.1} parent=1 // pred_region
      %s32 = ssub.s32 1024, 1024
      %33 = vsyncadd [#allocation6], %s32
      %s34 = sshll.u32 [#allocation5], 4
      %s35 = int_to_ptr.vmem [resolvable:$true] %s34
      %40 = dma.hbm_to_vmem [thread:$0]  %s3, 1024, %s35, [#allocation6], 64, 64, 4
    $region17: #{tpu_custom_call.1} parent=1 // pred_fallthru
      _
    // Predicated region
    $region18: #{tpu_custom_call.1} parent=1 // pred_check
      _
    $region19: #{tpu_custom_call.1} parent=1 // pred_check_branch
      %42 = sbr.rel (0) target = $region21
    $region20: #{tpu_custom_call.1} parent=1 // pred_region
      _
    $region21: #{tpu_custom_call.1} parent=1 // pred_fallthru
      _
    // Predicated region
    $region22: #{tpu_custom_call.1} parent=1 // pred_check
      _
    $region23: #{tpu_custom_call.1} parent=1 // pred_check_branch
      %44 = sbr.rel (0) target = $region25
    $region24: #{tpu_custom_call.1} parent=1 // pred_region
      %45 = dma.done [#allocation3], 512
    $region25: #{tpu_custom_call.1} parent=1 // pred_fallthru
      _
    // Predicated region
    $region26: #{tpu_custom_call.1} parent=1 // pred_check
      _
    $region27: #{tpu_custom_call.1} parent=1 // pred_check_branch
      %47 = sbr.rel (0) target = $region29
    $region28: #{tpu_custom_call.1} parent=1 // pred_region
      %48 = dma.done [#allocation6], 1024
    $region29: #{tpu_custom_call.1} parent=1 // pred_fallthru
      _
    %v50 = vld [vmem:[#allocation2] sm:$0xff]
    %v51 = vld [vmem:[#allocation2 + $0x8] sm:$0xff]
    %v52 = vld [vmem:[#allocation2 + $0x10] sm:$0xff]
    %v53 = vld [vmem:[#allocation2 + $0x18] sm:$0xff]
    %v54 = vlaneseq
    %v55 = vand.u32 %v54, 127
    %vm56 = vcmp.lt.s32.totalorder %v55, 48
    %v57 = vsel %vm56, 1, 0
    %vm58 = vcmp.eq.s32.totalorder %v57, 1
    %v59 = vsel %vm58, %v50, 0.0
    %v60 = vsel %vm58, %v51, 0.0
    %v61 = vsel %vm58, %v52, 0.0
    %v62 = vsel %vm58, %v53, 0.0
    %63 = vadd.xlane.f32.xlu0 %v59
    %v64 = vpop.xlane.xlu0 %63
    %65 = vadd.xlane.f32.xlu0 %v60
    %v66 = vpop.xlane.xlu0 %65
    %67 = vadd.xlane.f32.xlu0 %v61
    %v68 = vpop.xlane.xlu0 %67
    %69 = vadd.xlane.f32.xlu0 %v62
    %v70 = vpop.xlane.xlu0 %69
    %v71 = vmul.f32 %v64, 0.020833334
    %v72 = vmul.f32 %v66, 0.020833334
    %v73 = vmul.f32 %v68, 0.020833334
    %v74 = vmul.f32 %v70, 0.020833334
    %v75 = vsub.f32 %v59, %v71
    %v76 = vsub.f32 %v60, %v72
    %v77 = vsub.f32 %v61, %v73
    %v78 = vsub.f32 %v62, %v74
    %v79 = vsel %vm58, %v75, 0.0
    %v80 = vsel %vm58, %v76, 0.0
    %v81 = vsel %vm58, %v77, 0.0
    %v82 = vsel %vm58, %v78, 0.0
    %v83 = vmul.f32 %v79, %v79
    %v84 = vmul.f32 %v80, %v80
    %v85 = vmul.f32 %v81, %v81
    %v86 = vmul.f32 %v82, %v82
    %87 = vadd.xlane.f32.xlu0 %v83
    %v88 = vpop.xlane.xlu0 %87
    %89 = vadd.xlane.f32.xlu0 %v84
    %v90 = vpop.xlane.xlu0 %89
    %91 = vadd.xlane.f32.xlu0 %v85
    %v92 = vpop.xlane.xlu0 %91
    %93 = vadd.xlane.f32.xlu0 %v86
    %v94 = vpop.xlane.xlu0 %93
    %v95 = vmul.f32 %v88, 0.020833334
    %v96 = vmul.f32 %v90, 0.020833334
    %v97 = vmul.f32 %v92, 0.020833334
    %v98 = vmul.f32 %v94, 0.020833334
    %v99 = vadd.f32 %v95, 1e-05
    %v100 = vadd.f32 %v96, 1e-05
    %v101 = vadd.f32 %v97, 1e-05
    %v102 = vadd.f32 %v98, 1e-05
    %v103 = vrsqrt.pop %v99
    %v104 = vrsqrt.pop %v100
    %v105 = vrsqrt.pop %v101
    %v106 = vrsqrt.pop %v102
    %v107 = vmul.f32 %v79, %v103
    %v108 = vmul.f32 %v80, %v104
    %v109 = vmul.f32 %v81, %v105
    %v110 = vmul.f32 %v82, %v106
    %v111 = vld [vmem:[%s1] sm:$0x1]
    %v113 = vlaneseq
    %v114 = vshrl.u32 %v113, 7
    %v115 = vsub.s32 0, %v114
    %v116 = vrot.slane %v111, %v115
    %v118 = vmul.f32 %v107, %v116
    %v119 = vmul.f32 %v108, %v116
    %v120 = vmul.f32 %v109, %v116
    %v121 = vmul.f32 %v110, %v116
    %v122 = vld [vmem:[%s2] sm:$0x1]
    %v124 = vlaneseq
    %v125 = vshrl.u32 %v124, 7
    %v126 = vsub.s32 0, %v125
    %v127 = vrot.slane %v122, %v126
    %v129 = vadd.f32 %v118, %v127
    %v130 = vadd.f32 %v119, %v127
    %v131 = vadd.f32 %v120, %v127
    %v132 = vadd.f32 %v121, %v127
    %v133 = vpack.c.bf16 %v130, %v129
    %v134 = vpack.c.bf16 %v132, %v131
    %v135 = vld [vmem:[#allocation5] sm:$0xf]
    %v136 = vld [vmem:[#allocation5 + $0x4] sm:$0xf]
    %v137 = vld [vmem:[#allocation5 + $0x8] sm:$0xf]
    %v138 = vld [vmem:[#allocation5 + $0xc] sm:$0xf]
    %v139 = vld [vmem:[#allocation5 + $0x10] sm:$0xf]
    %v140 = vld [vmem:[#allocation5 + $0x14] sm:$0xf]
    %v141 = vld [vmem:[#allocation5 + $0x18] sm:$0xf]
    %v142 = vld [vmem:[#allocation5 + $0x1c] sm:$0xf]
    %v143 = vld [vmem:[#allocation5 + $0x20] sm:$0xf]
    %v144 = vld [vmem:[#allocation5 + $0x24] sm:$0xf]
    %v145 = vld [vmem:[#allocation5 + $0x28] sm:$0xf]
    %v146 = vld [vmem:[#allocation5 + $0x2c] sm:$0xf]
    %v147 = vld [vmem:[#allocation5 + $0x30] sm:$0xf]
    %v148 = vld [vmem:[#allocation5 + $0x34] sm:$0xf]
    %v149 = vld [vmem:[#allocation5 + $0x38] sm:$0xf]
    %v150 = vld [vmem:[#allocation5 + $0x3c] sm:$0xf]
    %v151 = vld [vmem:[%s4] sm:$0x1]
    %v153 = vlaneseq
    %v154 = vshrl.u32 %v153, 7
    %v155 = vsub.s32 0, %v154
    %v156 = vrot.slane %v151, %v155
    %v174 = vunpack.c.l.b16 %v135
    %v175 = vunpack.c.l.b16 %v136
    %v176 = vunpack.c.l.b16 %v137
    %v177 = vunpack.c.l.b16 %v138
    %v178 = vunpack.c.l.b16 %v139
    %v179 = vunpack.c.l.b16 %v140
    %v180 = vunpack.c.l.b16 %v141
    %v181 = vunpack.c.l.b16 %v142
    %v182 = vunpack.c.l.b16 %v143
    %v183 = vunpack.c.l.b16 %v144
    %v184 = vunpack.c.l.b16 %v145
    %v185 = vunpack.c.l.b16 %v146
    %v186 = vunpack.c.l.b16 %v147
    %v187 = vunpack.c.l.b16 %v148
    %v188 = vunpack.c.l.b16 %v149
    %v189 = vunpack.c.l.b16 %v150
    %v190 = vpack.c.b16 %v175, %v174
    %v191 = vpack.c.b16 %v177, %v176
    %v192 = vpack.c.b16 %v179, %v178
    %v193 = vpack.c.b16 %v181, %v180
    %v194 = vpack.c.b16 %v183, %v182
    %v195 = vpack.c.b16 %v185, %v184
    %v196 = vpack.c.b16 %v187, %v186
    %v197 = vpack.c.b16 %v189, %v188
    %206 = vmatprep.subr.bf16.mxu0 0
    %207 = vmatpush1.bf16.msra.mxu0 %v190
    %208 = vmatprep.subr.bf16.mxu0 0
    %209 = vmatpush1.bf16.msra.mxu0 %v191
    %210 = vmatprep.subr.bf16.mxu0 0
    %211 = vmatpush1.bf16.msra.mxu0 %v192
    %212 = vmatprep.subr.bf16.mxu0 0
    %213 = vmatpush1.bf16.msra.mxu0 %v193
    %214 = vmatprep.subr.bf16.mxu0 0
    %215 = vmatpush1.bf16.msra.mxu0 %v194
    %216 = vmatprep.subr.bf16.mxu0 0
    %217 = vmatpush1.bf16.msra.mxu0 %v195
    %218 = vmatprep.subr.bf16.mxu0 0
    %219 = vmatpush1.bf16.msra.mxu0 %v196
    %220 = vmatprep.subr.bf16.mxu0 0
    %221 = vmatpush1.bf16.msra.mxu0 %v197
    %222 = vmatprep.subr.bf16.mxu0 0
    %223 = vmatpush1.bf16.msra.mxu0 0
    %224 = vmatprep.subr.bf16.mxu0 0
    %225 = vmatpush1.bf16.msra.mxu0 0
    %226 = vmatprep.subr.bf16.mxu0 0
    %227 = vmatpush1.bf16.msra.mxu0 0
    %228 = vmatprep.subr.bf16.mxu0 0
    %229 = vmatpush1.bf16.msra.mxu0 0
    %230 = vmatprep.subr.bf16.mxu0 0
    %231 = vmatpush1.bf16.msra.mxu0 0
    %232 = vmatprep.subr.bf16.mxu0 0
    %233 = vmatpush1.bf16.msra.mxu0 0
    %234 = vmatprep.subr.bf16.mxu0 0
    %235 = vmatpush1.bf16.msra.mxu0 0
    %236 = vmatprep.subr.bf16.mxu0 0
    %237 = vmatpush1.bf16.msra.mxu0 0
    %238 = vmatprep.mubr.bf16.mxu0 0
    %239 = vmatmul.mubr.bf16.gmra.mrb[0].mxu0 %v133
    %v240 = vpop.f32.mrb[0].mxu0
    %v241 = vadd.f32 %v156, %v240
    %v242 = vpop.f32.mrb[0].mxu0
    %v243 = vpop.f32.mrb[0].mxu0
    %v244 = vadd.f32 %v156, %v243
    %v245 = vpop.f32.mrb[0].mxu0
    %246 = vmatprep.mubr.bf16.mxu0 0
    %247 = vmatmul.mubr.bf16.gmra.mrb[0].mxu0 %v134
    %v248 = vpop.f32.mrb[0].mxu0
    %v249 = vadd.f32 %v156, %v248
    %v250 = vpop.f32.mrb[0].mxu0
    %v251 = vpop.f32.mrb[0].mxu0
    %v252 = vadd.f32 %v156, %v251
    %v253 = vpop.f32.mrb[0].mxu0
    %254 = vdwg.mxu0
    %255 = vst [vmem:[#allocation7] sm:$0xff] %v241
    %256 = vst [vmem:[#allocation7 + $0x8] sm:$0xff] %v244
    %257 = vst [vmem:[#allocation7 + $0x10] sm:$0xff] %v249
    %258 = vst [vmem:[#allocation7 + $0x18] sm:$0xff] %v252
    // Predicated region
    $region30: #{tpu_custom_call.1} parent=1 // pred_check
      _
    $region31: #{tpu_custom_call.1} parent=1 // pred_check_branch
      %260 = sbr.rel (0) target = $region33
    $region32: #{tpu_custom_call.1} parent=1 // pred_region
      %s262 = ssub.s32 512, 512
      %263 = vsyncadd [#allocation4], %s262
      %s264 = sshll.u32 [#allocation7], 4
      %s265 = int_to_ptr.vmem [resolvable:$true] %s264
      %270 = dma.vmem_to_hbm [thread:$0]  %s265, 512, %s5, [#allocation4], 128, 128, 8
    $region33: #{tpu_custom_call.1} parent=1 // pred_fallthru
      _
    // Predicated region
    $region34: #{tpu_custom_call.1} parent=1 // pred_check
      _
    $region35: #{tpu_custom_call.1} parent=1 // pred_check_branch
      %272 = sbr.rel (0) target = $region37
    $region36: #{tpu_custom_call.1} parent=1 // pred_region
      %273 = dma.done [#allocation4], 512
    $region37: #{tpu_custom_call.1} parent=1 // pred_fallthru
      _
    %274 = vsyncpa [#allocation3], 1
    %275 = vsyncpa [#allocation6], 1
    %276 = vsyncpa [#allocation4], 1

// kernel: tpu_custom_call.1
$region0: #{tpu_custom_call.1}
  #allocation0 [shape = 'u32[]', space=smem, size = 0x4, offset = 0x4, fixed_abs, tag = 'smem constant byte address 0x4 - core index']
  #allocation1 [shape = 'u32[144,128]{1,0:T(1,128)}', space=vmem, size = 0x12000, scoped, tag = 'internal scratch']
  %s0 = inlined_call_operand.hbm [shape: f32[32,128], index: 0, kind: input, shape index: {}]
  %s1 = inlined_call_operand.vmem [shape: f32[1,128], index: 1, kind: input, shape index: {}]
  %s2 = inlined_call_operand.vmem [shape: f32[1,128], index: 2, kind: input, shape index: {}]
  %s3 = inlined_call_operand.hbm [shape: bf16[128,128], index: 3, kind: input, shape index: {}]
  %s4 = inlined_call_operand.vmem [shape: f32[1,128], index: 4, kind: input, shape index: {}]
  %s5 = inlined_call_operand.hbm [shape: f32[32,128], index: 5, kind: output, shape index: {}]
  %s6 = sld [smem:[#allocation0]]
  $region38: #{tpu_custom_call.1} parent=0
    _
  %s8 = ssub.s32 1, %s6
  %s9 = scalar_select 0, %s8, %s6
  $region1: #{tpu_custom_call.1} parent=0
    #allocation2 [shape = 'u8[16384]{0}', space=vmem, size = 0x4000, scoped, tag = 'input window, operand 0, single buffered']
    #allocation3 [shape = 's32[1]{0}', space=sflag, size = 0x4, scoped, tag = 'scoped memory for tpu_custom_call.1']
    #allocation4 [shape = 's32[1]{0}', space=sflag, size = 0x4, scoped, tag = 'scoped memory for tpu_custom_call.1']
    #allocation5 [shape = 'u8[32768]{0}', space=vmem, size = 0x8000, scoped, tag = 'input window, operand 3, single buffered']
    #allocation6 [shape = 's32[1]{0}', space=sflag, size = 0x4, scoped, tag = 'scoped memory for tpu_custom_call.1']
    #allocation7 [shape = 'u8[16384]{0}', space=vmem, size = 0x4000, scoped, tag = 'output window, operand 0, single buffered']
    %10 = vsyncpa [#allocation3], 0
    %11 = vsyncpa [#allocation6], 0
    %12 = vsyncpa [#allocation4], 0
    // Predicated region
    $region2: #{tpu_custom_call.1} parent=1 // pred_check
      _
    $region3: #{tpu_custom_call.1} parent=1 // pred_check_branch
      %14 = sbr.rel (0) target = $region5
    $region4: #{tpu_custom_call.1} parent=1 // pred_region
      %s16 = ssub.s32 512, 512
      %17 = vsyncadd [#allocation3], %s16
      %s18 = sshll.u32 [#allocation2], 4
      %s19 = int_to_ptr.vmem [resolvable:$true] %s18
      %24 = dma.hbm_to_vmem [thread:$0]  %s0, 512, %s19, [#allocation3], 128, 128, 8
    $region5: #{tpu_custom_call.1} parent=1 // pred_fallthru
      _
    // Predicated region
    $region6: #{tpu_custom_call.1} parent=1 // pred_check
      _
    $region7: #{tpu_custom_call.1} parent=1 // pred_check_branch
      %26 = sbr.rel (0) target = $region9
    $region8: #{tpu_custom_call.1} parent=1 // pred_region
      _
    $region9: #{tpu_custom_call.1} parent=1 // pred_fallthru
      _
    // Predicated region
    $region10: #{tpu_custom_call.1} parent=1 // pred_check
      _
    $region11: #{tpu_custom_call.1} parent=1 // pred_check_branch
      %28 = sbr.rel (0) target = $region13
    $region12: #{tpu_custom_call.1} parent=1 // pred_region
      _
    $region13: #{tpu_custom_call.1} parent=1 // pred_fallthru
      _
    // Predicated region
    $region14: #{tpu_custom_call.1} parent=1 // pred_check
      _
    $region15: #{tpu_custom_call.1} parent=1 // pred_check_branch
      %30 = sbr.rel (0) target = $region17
    $region16: #{tpu_custom_call.1} parent=1 // pred_region
      %s32 = ssub.s32 1024, 1024
      %33 = vsyncadd [#allocation6], %s32
      %s34 = sshll.u32 [#allocation5], 4
      %s35 = int_to_ptr.vmem [resolvable:$true] %s34
      %40 = dma.hbm_to_vmem [thread:$0]  %s3, 1024, %s35, [#allocation6], 64, 64, 4
    $region17: #{tpu_custom_call.1} parent=1 // pred_fallthru
      _
    // Predicated region
    $region18: #{tpu_custom_call.1} parent=1 // pred_check
      _
    $region19: #{tpu_custom_call.1} parent=1 // pred_check_branch
      %42 = sbr.rel (0) target = $region21
    $region20: #{tpu_custom_call.1} parent=1 // pred_region
      _
    $region21: #{tpu_custom_call.1} parent=1 // pred_fallthru
      _
    // Predicated region
    $region22: #{tpu_custom_call.1} parent=1 // pred_check
      _
    $region23: #{tpu_custom_call.1} parent=1 // pred_check_branch
      %44 = sbr.rel (0) target = $region25
    $region24: #{tpu_custom_call.1} parent=1 // pred_region
      %45 = dma.done [#allocation3], 512
    $region25: #{tpu_custom_call.1} parent=1 // pred_fallthru
      _
    // Predicated region
    $region26: #{tpu_custom_call.1} parent=1 // pred_check
      _
    $region27: #{tpu_custom_call.1} parent=1 // pred_check_branch
      %47 = sbr.rel (0) target = $region29
    $region28: #{tpu_custom_call.1} parent=1 // pred_region
      %48 = dma.done [#allocation6], 1024
    $region29: #{tpu_custom_call.1} parent=1 // pred_fallthru
      _
    %v50 = vld [vmem:[#allocation2] sm:$0xff]
    %v51 = vld [vmem:[#allocation2 + $0x8] sm:$0xff]
    %v52 = vld [vmem:[#allocation2 + $0x10] sm:$0xff]
    %v53 = vld [vmem:[#allocation2 + $0x18] sm:$0xff]
    %v54 = vlaneseq
    %v55 = vand.u32 %v54, 127
    %vm56 = vcmp.lt.s32.totalorder %v55, 48
    %v57 = vsel %vm56, 1, 0
    %vm58 = vcmp.eq.s32.totalorder %v57, 1
    %v59 = vsel %vm58, %v50, 0.0
    %v60 = vsel %vm58, %v51, 0.0
    %v61 = vsel %vm58, %v52, 0.0
    %v62 = vsel %vm58, %v53, 0.0
    %63 = vadd.xlane.f32.xlu0 %v59
    %v64 = vpop.xlane.xlu0 %63
    %65 = vadd.xlane.f32.xlu0 %v60
    %v66 = vpop.xlane.xlu0 %65
    %67 = vadd.xlane.f32.xlu0 %v61
    %v68 = vpop.xlane.xlu0 %67
    %69 = vadd.xlane.f32.xlu0 %v62
    %v70 = vpop.xlane.xlu0 %69
    %v71 = vmul.f32 %v64, 0.020833334
    %v72 = vmul.f32 %v66, 0.020833334
    %v73 = vmul.f32 %v68, 0.020833334
    %v74 = vmul.f32 %v70, 0.020833334
    %v75 = vsub.f32 %v59, %v71
    %v76 = vsub.f32 %v60, %v72
    %v77 = vsub.f32 %v61, %v73
    %v78 = vsub.f32 %v62, %v74
    %v79 = vsel %vm58, %v75, 0.0
    %v80 = vsel %vm58, %v76, 0.0
    %v81 = vsel %vm58, %v77, 0.0
    %v82 = vsel %vm58, %v78, 0.0
    %v83 = vmul.f32 %v79, %v79
    %v84 = vmul.f32 %v80, %v80
    %v85 = vmul.f32 %v81, %v81
    %v86 = vmul.f32 %v82, %v82
    %87 = vadd.xlane.f32.xlu0 %v83
    %v88 = vpop.xlane.xlu0 %87
    %89 = vadd.xlane.f32.xlu0 %v84
    %v90 = vpop.xlane.xlu0 %89
    %91 = vadd.xlane.f32.xlu0 %v85
    %v92 = vpop.xlane.xlu0 %91
    %93 = vadd.xlane.f32.xlu0 %v86
    %v94 = vpop.xlane.xlu0 %93
    %v95 = vmul.f32 %v88, 0.020833334
    %v96 = vmul.f32 %v90, 0.020833334
    %v97 = vmul.f32 %v92, 0.020833334
    %v98 = vmul.f32 %v94, 0.020833334
    %v99 = vadd.f32 %v95, 1e-05
    %v100 = vadd.f32 %v96, 1e-05
    %v101 = vadd.f32 %v97, 1e-05
    %v102 = vadd.f32 %v98, 1e-05
    %v103 = vrsqrt.pop %v99
    %v104 = vrsqrt.pop %v100
    %v105 = vrsqrt.pop %v101
    %v106 = vrsqrt.pop %v102
    %v107 = vmul.f32 %v79, %v103
    %v108 = vmul.f32 %v80, %v104
    %v109 = vmul.f32 %v81, %v105
    %v110 = vmul.f32 %v82, %v106
    %v111 = vld [vmem:[%s1] sm:$0x1]
    %v113 = vlaneseq
    %v114 = vshrl.u32 %v113, 7
    %v115 = vsub.s32 0, %v114
    %v116 = vrot.slane %v111, %v115
    %v118 = vmul.f32 %v107, %v116
    %v119 = vmul.f32 %v108, %v116
    %v120 = vmul.f32 %v109, %v116
    %v121 = vmul.f32 %v110, %v116
    %v122 = vld [vmem:[%s2] sm:$0x1]
    %v124 = vlaneseq
    %v125 = vshrl.u32 %v124, 7
    %v126 = vsub.s32 0, %v125
    %v127 = vrot.slane %v122, %v126
    %v129 = vadd.f32 %v118, %v127
    %v130 = vadd.f32 %v119, %v127
    %v131 = vadd.f32 %v120, %v127
    %v132 = vadd.f32 %v121, %v127
    %v133 = vpack.c.bf16 %v130, %v129
    %v134 = vpack.c.bf16 %v132, %v131
    %v135 = vld [vmem:[#allocation5] sm:$0xf]
    %v136 = vld [vmem:[#allocation5 + $0x4] sm:$0xf]
    %v137 = vld [vmem:[#allocation5 + $0x8] sm:$0xf]
    %v138 = vld [vmem:[#allocation5 + $0xc] sm:$0xf]
    %v139 = vld [vmem:[#allocation5 + $0x10] sm:$0xf]
    %v140 = vld [vmem:[#allocation5 + $0x14] sm:$0xf]
    %v141 = vld [vmem:[#allocation5 + $0x18] sm:$0xf]
    %v142 = vld [vmem:[#allocation5 + $0x1c] sm:$0xf]
    %v143 = vld [vmem:[#allocation5 + $0x20] sm:$0xf]
    %v144 = vld [vmem:[#allocation5 + $0x24] sm:$0xf]
    %v145 = vld [vmem:[#allocation5 + $0x28] sm:$0xf]
    %v146 = vld [vmem:[#allocation5 + $0x2c] sm:$0xf]
    %v147 = vld [vmem:[#allocation5 + $0x30] sm:$0xf]
    %v148 = vld [vmem:[#allocation5 + $0x34] sm:$0xf]
    %v149 = vld [vmem:[#allocation5 + $0x38] sm:$0xf]
    %v150 = vld [vmem:[#allocation5 + $0x3c] sm:$0xf]
    %v151 = vld [vmem:[%s4] sm:$0x1]
    %v153 = vlaneseq
    %v154 = vshrl.u32 %v153, 7
    %v155 = vsub.s32 0, %v154
    %v156 = vrot.slane %v151, %v155
    %v174 = vunpack.c.l.b16 %v135
    %v175 = vunpack.c.l.b16 %v136
    %v176 = vunpack.c.l.b16 %v137
    %v177 = vunpack.c.l.b16 %v138
    %v178 = vunpack.c.l.b16 %v139
    %v179 = vunpack.c.l.b16 %v140
    %v180 = vunpack.c.l.b16 %v141
    %v181 = vunpack.c.l.b16 %v142
    %v182 = vunpack.c.l.b16 %v143
    %v183 = vunpack.c.l.b16 %v144
    %v184 = vunpack.c.l.b16 %v145
    %v185 = vunpack.c.l.b16 %v146
    %v186 = vunpack.c.l.b16 %v147
    %v187 = vunpack.c.l.b16 %v148
    %v188 = vunpack.c.l.b16 %v149
    %v189 = vunpack.c.l.b16 %v150
    %v190 = vpack.c.b16 %v175, %v174
    %v191 = vpack.c.b16 %v177, %v176
    %v192 = vpack.c.b16 %v179, %v178
    %v193 = vpack.c.b16 %v181, %v180
    %v194 = vpack.c.b16 %v183, %v182
    %v195 = vpack.c.b16 %v185, %v184
    %v196 = vpack.c.b16 %v187, %v186
    %v197 = vpack.c.b16 %v189, %v188
    %206 = vmatprep.subr.bf16.mxu0 0
    %207 = vmatpush1.bf16.msra.mxu0 %v190
    %208 = vmatprep.subr.bf16.mxu0 0
    %209 = vmatpush1.bf16.msra.mxu0 %v191
    %210 = vmatprep.subr.bf16.mxu0 0
    %211 = vmatpush1.bf16.msra.mxu0 %v192
    %212 = vmatprep.subr.bf16.mxu0 0
    %213 = vmatpush1.bf16.msra.mxu0 %v193
    %214 = vmatprep.subr.bf16.mxu0 0
    %215 = vmatpush1.bf16.msra.mxu0 %v194
    %216 = vmatprep.subr.bf16.mxu0 0
    %217 = vmatpush1.bf16.msra.mxu0 %v195
    %218 = vmatprep.subr.bf16.mxu0 0
    %219 = vmatpush1.bf16.msra.mxu0 %v196
    %220 = vmatprep.subr.bf16.mxu0 0
    %221 = vmatpush1.bf16.msra.mxu0 %v197
    %222 = vmatprep.subr.bf16.mxu0 0
    %223 = vmatpush1.bf16.msra.mxu0 0
    %224 = vmatprep.subr.bf16.mxu0 0
    %225 = vmatpush1.bf16.msra.mxu0 0
    %226 = vmatprep.subr.bf16.mxu0 0
    %227 = vmatpush1.bf16.msra.mxu0 0
    %228 = vmatprep.subr.bf16.mxu0 0
    %229 = vmatpush1.bf16.msra.mxu0 0
    %230 = vmatprep.subr.bf16.mxu0 0
    %231 = vmatpush1.bf16.msra.mxu0 0
    %232 = vmatprep.subr.bf16.mxu0 0
    %233 = vmatpush1.bf16.msra.mxu0 0
    %234 = vmatprep.subr.bf16.mxu0 0
    %235 = vmatpush1.bf16.msra.mxu0 0
    %236 = vmatprep.subr.bf16.mxu0 0
    %237 = vmatpush1.bf16.msra.mxu0 0
    %238 = vmatprep.mubr.bf16.mxu0 0
    %239 = vmatmul.mubr.bf16.gmra.mrb[0].mxu0 %v133
    %v240 = vpop.f32.mrb[0].mxu0
    %v241 = vadd.f32 %v156, %v240
    %v242 = vpop.f32.mrb[0].mxu0
    %v243 = vpop.f32.mrb[0].mxu0
    %v244 = vadd.f32 %v156, %v243
    %v245 = vpop.f32.mrb[0].mxu0
    %246 = vmatprep.mubr.bf16.mxu0 0
    %247 = vmatmul.mubr.bf16.gmra.mrb[0].mxu0 %v134
    %v248 = vpop.f32.mrb[0].mxu0
    %v249 = vadd.f32 %v156, %v248
    %v250 = vpop.f32.mrb[0].mxu0
    %v251 = vpop.f32.mrb[0].mxu0
    %v252 = vadd.f32 %v156, %v251
    %v253 = vpop.f32.mrb[0].mxu0
    %254 = vdwg.mxu0
    %255 = vst [vmem:[#allocation7] sm:$0xff] %v241
    %256 = vst [vmem:[#allocation7 + $0x8] sm:$0xff] %v244
    %257 = vst [vmem:[#allocation7 + $0x10] sm:$0xff] %v249
    %258 = vst [vmem:[#allocation7 + $0x18] sm:$0xff] %v252
    // Predicated region
    $region30: #{tpu_custom_call.1} parent=1 // pred_check
      _
    $region31: #{tpu_custom_call.1} parent=1 // pred_check_branch
      %260 = sbr.rel (0) target = $region33
    $region32: #{tpu_custom_call.1} parent=1 // pred_region
      %s262 = ssub.s32 512, 512
      %263 = vsyncadd [#allocation4], %s262
      %s264 = sshll.u32 [#allocation7], 4
      %s265 = int_to_ptr.vmem [resolvable:$true] %s264
      %270 = dma.vmem_to_hbm [thread:$0]  %s265, 512, %s5, [#allocation4], 128, 128, 8
    $region33: #{tpu_custom_call.1} parent=1 // pred_fallthru
      _
    // Predicated region
    $region34: #{tpu_custom_call.1} parent=1 // pred_check
      _
    $region35: #{tpu_custom_call.1} parent=1 // pred_check_branch
      %272 = sbr.rel (0) target = $region37
    $region36: #{tpu_custom_call.1} parent=1 // pred_region
      %273 = dma.done [#allocation4], 512
    $region37: #{tpu_custom_call.1} parent=1 // pred_fallthru
      _
    %274 = vsyncpa [#allocation3], 1
    %275 = vsyncpa [#allocation6], 1
    %276 = vsyncpa [#allocation4], 1

</llo_original>
